<compile_context>
chip_gen: v6e
topology: v6e:2x2x1
jax: 0.10.0
libtpu: 0.0.40
codegen_flags: <defaults>
</compile_context>

<pallas_src>
import jax
import jax.numpy as jnp
from jax import lax
from jax.experimental import pallas as pl
from jax.experimental.pallas import tpu as pltpu

_SUB, _LANE = 8, 128
_TILE_ROWS = 8192    # rows of 128 lanes per DMA block (4 MiB f32 per input)
_CHUNK_ROWS = 1024   # rows per in-kernel accumulate chunk (512 KiB f32)


def _round_up(x, m):
    return ((x + m - 1) // m) * m


def _num_tc_splits():
    """2-way row split on chips with 2 TensorCores (v7x, v4/v5p megacore)."""
    try:
        kind = jax.devices()[0].device_kind.lower()
    except Exception:
        return 1
    return 2 if any(tag in kind for tag in ("v7", "7x", "v4", "v5p")) else 1


def _make_dice_kernel(tile_rows, chunk_rows, n_rows, steps_per_split,
                      mask_possible):
    """Builds the kernel with static tile/chunk/row counts baked in."""
    n_full = tile_rows // chunk_rows
    rem_rows = tile_rows % chunk_rows          # multiple of 8 (possibly 0)

    def kernel(p_ref, t_ref, o_ref):
        split = pl.program_id(0)               # TensorCore split
        step = pl.program_id(1)                # block within this split

        # Output block is resident across the inner ("arbitrary") axis and is
        # used directly as the accumulator (pattern P3).
        @pl.when(step == 0)
        def _init():
            o_ref[...] = jnp.zeros_like(o_ref)

        # Logical first row of this block (unclamped; used only for masking).
        row0 = (split * steps_per_split + step) * tile_rows

        def accum(start, rows, masked):
            # In-kernel dtype cast: inputs stream from HBM in native dtype.
            p = p_ref[pl.ds(start, rows), :].astype(jnp.float32)
            t = t_ref[pl.ds(start, rows), :].astype(jnp.float32)
            if masked:
                ridx = (lax.broadcasted_iota(jnp.int32, (rows, _LANE), 0)
                        + row0 + start)
                keep = ridx < n_rows
                p = jnp.where(keep, p, 0.0)
                t = jnp.where(keep, t, 0.0)
            g = rows // _SUB
            # (rows,128) -> (g,8,128) -> sum over axis 0: pure vreg adds.
            o_ref[0, 0] += (p * t).reshape(g, _SUB, _LANE).sum(axis=0)
            o_ref[0, 1] += (p * p).reshape(g, _SUB, _LANE).sum(axis=0)
            o_ref[0, 2] += (t * t).reshape(g, _SUB, _LANE).sum(axis=0)

        def run(masked):
            if n_full == 1 and rem_rows == 0:
                accum(0, chunk_rows, masked)
            else:
                def body(k, carry):
                    accum(pl.multiple_of(k * chunk_rows, chunk_rows),
                          chunk_rows, masked)
                    return carry
                lax.fori_loop(0, n_full, body, 0, unroll=True)
                if rem_rows:
                    accum(n_full * chunk_rows, rem_rows, masked)

        if mask_possible:
            in_bounds = row0 + tile_rows <= n_rows

            @pl.when(in_bounds)          # steady state: no mask ops at all
            def _steady():
                run(masked=False)

            @pl.when(jnp.logical_not(in_bounds))   # ragged / padded blocks
            def _edge():
                run(masked=True)
        else:
            run(masked=False)

    return kernel


def dice_loss(pred, target, smooth=1.0, *, max_tile_rows=_TILE_ROWS,
              chunk_rows=_CHUNK_ROWS, num_splits=None):
    """Pallas TPU implementation of DiceLoss.forward. Returns a scalar f32."""
    pred = jnp.asarray(pred)
    target = jnp.asarray(target)
    assert pred.shape == target.shape, "pred/target must have the same shape"

    pf = pred.reshape(-1)
    tf = target.reshape(-1)
    n = pf.shape[0]

    # Lane-align the flat length. For n % 128 == 0 (the common case) this is
    # metadata-only: no extra HBM pass. Only lane-ragged sizes pay a pad copy.
    # TODO(synk): stream lane-ragged tails as 1-D blocks with element-level
    # masking to remove this copy for n % 128 != 0 as well.
    pad = (-n) % _LANE
    if pad:
        pf = jnp.pad(pf, (0, pad))
        tf = jnp.pad(tf, (0, pad))
    n_rows = (n + pad) // _LANE

    pf = pf.reshape(n_rows, _LANE)
    tf = tf.reshape(n_rows, _LANE)

    # DMA block: as large as possible to amortize per-step overhead, never
    # larger than the (8-rounded) row count. (8192 rows is sized for
    # v6e/v7x HBM streaming; it also works on v5e because we raise the
    # scoped-VMEM limit explicitly below.)
    if n_rows <= max_tile_rows:
        tile_rows = _round_up(n_rows, _SUB)
    else:
        tile_rows = max_tile_rows
    chunk_rows = max(_SUB, (min(chunk_rows, tile_rows) // _SUB) * _SUB)

    n_blocks = pl.cdiv(n_rows, tile_rows)
    if num_splits is None:
        num_splits = _num_tc_splits()
    n_splits = num_splits if n_blocks >= 2 else 1
    steps_per_split = pl.cdiv(n_blocks, n_splits)
    # True iff any (possibly grid-padded) block reaches past n_rows.
    mask_possible = n_splits * steps_per_split * tile_rows > n_rows

    last_block = n_blocks - 1
    if n_splits * steps_per_split == n_blocks:
        in_map = lambda c, i: (c * steps_per_split + i, 0)
    else:
        # Clamp grid-padding blocks onto the last real block (their rows are
        # fully masked in-kernel) so no DMA ever reads out of bounds.
        in_map = lambda c, i: (jnp.minimum(c * steps_per_split + i,
                                           last_block), 0)

    # Double-buffered input blocks + chunk-sized temporaries, with headroom.
    # Stays well under v7x's 64 MiB physical VMEM; overrides v5e's 16 MiB
    # default scoped limit when blocks are large.
    itemsize = jnp.dtype(pf.dtype).itemsize + jnp.dtype(tf.dtype).itemsize
    block_bytes = tile_rows * _LANE * itemsize
    vmem_limit = int(min(112 << 20, max(32 << 20, 2 * block_bytes + (8 << 20))))

    partials = pl.pallas_call(
        _make_dice_kernel(tile_rows, chunk_rows, n_rows, steps_per_split,
                          mask_possible),
        out_shape=jax.ShapeDtypeStruct((n_splits, 3, _SUB, _LANE), jnp.float32),
        grid_spec=pltpu.PrefetchScalarGridSpec(
            num_scalar_prefetch=0,
            grid=(n_splits, steps_per_split),
            in_specs=[
                pl.BlockSpec((tile_rows, _LANE), in_map),
                pl.BlockSpec((tile_rows, _LANE), in_map),
            ],
            out_specs=pl.BlockSpec((1, 3, _SUB, _LANE),
                                   lambda c, i: (c, 0, 0, 0)),
        ),
        compiler_params=pltpu.CompilerParams(
            dimension_semantics=("parallel", "arbitrary"),
            vmem_limit_bytes=vmem_limit,
        ),
    )(pf, tf)

    # Tiny epilogue on (n_splits, 3, 8, 128) partial sums: combine splits,
    # cross-lane reduce, and compute the score.
    sums = jnp.sum(partials, axis=(0, 2, 3))        # (3,)
    inter, a_sum, b_sum = sums[0], sums[1], sums[2]
    score = (2.0 * inter + smooth) / (a_sum + b_sum + smooth)
    return (1.0 - score).astype(jnp.float32)


def _dice_loss_ref(pred, target, smooth=1.0):
    p = jnp.asarray(pred).reshape(-1).astype(jnp.float32)
    t = jnp.asarray(target).reshape(-1).astype(jnp.float32)
    inter = jnp.sum(p * t)
    a = jnp.sum(p * p)
    b = jnp.sum(t * t)
    return 1.0 - (2.0 * inter + smooth) / (a + b + smooth)


if __name__ == "__main__":
    key = jax.random.PRNGKey(0)
    keys = jax.random.split(key, 10)

    # 1) Module-consistent demo shape: NCHW batch=2, channels=4, 16x16.
    pred = jax.random.uniform(keys[0], (2, 4, 16, 16), dtype=jnp.float32)
    target = (jax.random.uniform(keys[1], (2, 4, 16, 16)) > 0.5).astype(jnp.float32)
    out = jax.block_until_ready(dice_loss(pred, target, smooth=1.0))
    ref = _dice_loss_ref(pred, target, smooth=1.0)
    assert jnp.allclose(out, ref, rtol=1e-5, atol=1e-6), (out, ref)

    # 2) Lane-aligned but not (8*128)-aligned: ragged block -> remainder
    #    sub-chunk + tail-row masking, with NO wrapper pad/copy.
    p2 = jax.random.uniform(keys[2], (3, 5, 97, 128), dtype=jnp.float32)
    t2 = (jax.random.uniform(keys[3], (3, 5, 97, 128)) > 0.5).astype(jnp.float32)
    out2 = jax.block_until_ready(dice_loss(p2, t2))
    ref2 = _dice_loss_ref(p2, t2)
    assert jnp.allclose(out2, ref2, rtol=1e-5, atol=1e-5), (out2, ref2)

    # 3) Native bf16 streaming + multi-trip unrolled chunk loop.
    p3 = jax.random.uniform(keys[4], (2, 4, 320, 128),
                            dtype=jnp.float32).astype(jnp.bfloat16)
    t3 = (jax.random.uniform(keys[5], (2, 4, 320, 128)) > 0.5).astype(jnp.bfloat16)
    out3 = jax.block_until_ready(dice_loss(p3, t3))
    ref3 = _dice_loss_ref(p3, t3)
    assert jnp.allclose(out3, ref3, rtol=1e-4, atol=1e-4), (out3, ref3)

    # 4) Forced 2-way core split with small tiles: multi-block grid, grid
    #    padding (clamped, fully-masked block) and a partial last block.
    p4 = jax.random.uniform(keys[6], (2, 4, 97, 128), dtype=jnp.float32)
    t4 = (jax.random.uniform(keys[7], (2, 4, 97, 128)) > 0.5).astype(jnp.float32)
    out4 = jax.block_until_ready(dice_loss(p4, t4, max_tile_rows=64, num_splits=2))
    ref4 = _dice_loss_ref(p4, t4)
    assert jnp.allclose(out4, ref4, rtol=1e-5, atol=1e-5), (out4, ref4)

    # 5) Lane-ragged length (falls back to the small pad path).
    p5 = jax.random.uniform(keys[8], (2, 3, 13, 7), dtype=jnp.float32)
    t5 = (jax.random.uniform(keys[9], (2, 3, 13, 7)) > 0.5).astype(jnp.float32)
    out5 = jax.block_until_ready(dice_loss(p5, t5))
    ref5 = _dice_loss_ref(p5, t5)
    assert jnp.allclose(out5, ref5, rtol=1e-5, atol=1e-6), (out5, ref5)

    print("KERNEL_OK")
</pallas_src>

<mosaic_0001>
module attributes {stable_mosaic.version = 11 : i64} {
  func.func @kernel(%arg0: i32, %arg1: i32, %arg2: memref<16x128xf32, #tpu.memory_space<vmem>>, %arg3: memref<16x128xf32, #tpu.memory_space<vmem>>, %arg4: memref<1x3x8x128xf32, #tpu.memory_space<vmem>>) attributes {dimension_semantics = [#tpu.dimension_semantics<parallel>, #tpu.dimension_semantics<arbitrary>], iteration_bounds = array<i64: 1, 1>, scalar_prefetch = 0 : i64, scratch_operands = 0 : i64, tpu.core_type = #tpu.core_type<tc>, window_params = [{transform_indices = @transform_0, window_bounds = array<i64: 16, 128>}, {transform_indices = @transform_1, window_bounds = array<i64: 16, 128>}, {transform_indices = @transform_2, window_bounds = array<i64: 1, 3, 8, 128>}]} {
    %c0_i32 = arith.constant 0 : i32
    %0 = arith.cmpi eq, %arg1, %c0_i32 : i32
    %1 = arith.extui %0 : i1 to i32
    %c0_i32_0 = arith.constant 0 : i32
    %2 = arith.cmpi ne, %1, %c0_i32_0 : i32
    scf.if %2 {
      %cst_28 = arith.constant 0.000000e+00 : f32
      %32 = vector.broadcast %cst_28 : f32 to vector<1x3x8x128xf32>
      %c0_29 = arith.constant 0 : index
      %c0_30 = arith.constant 0 : index
      %c0_31 = arith.constant 0 : index
      %c0_32 = arith.constant 0 : index
      %33 = vector.load %arg4[%c0_29, %c0_30, %c0_31, %c0_32] : memref<1x3x8x128xf32, #tpu.memory_space<vmem>>, vector<1x3x8x128xf32>
      tpu.vector_store %arg4[%c0_29, %c0_30, %c0_31, %c0_32], %32 {strides = array<i32>} : memref<1x3x8x128xf32, #tpu.memory_space<vmem>>, vector<1x3x8x128xf32>,
    } else {
    }
    %c0 = arith.constant 0 : index
    %c0_1 = arith.constant 0 : index
    %3 = vector.load %arg2[%c0, %c0_1] : memref<16x128xf32, #tpu.memory_space<vmem>>, vector<16x128xf32>
    %c0_2 = arith.constant 0 : index
    %c0_3 = arith.constant 0 : index
    %4 = vector.load %arg3[%c0_2, %c0_3] : memref<16x128xf32, #tpu.memory_space<vmem>>, vector<16x128xf32>
    %c0_4 = arith.constant 0 : index
    %c0_5 = arith.constant 0 : index
    %c0_6 = arith.constant 0 : index
    %c0_7 = arith.constant 0 : index
    %5 = vector.load %arg4[%c0_4, %c0_5, %c0_6, %c0_7] : memref<1x3x8x128xf32, #tpu.memory_space<vmem>>, vector<1x1x8x128xf32>
    %6 = vector.shape_cast %5 : vector<1x1x8x128xf32> to vector<8x128xf32>
    %7 = arith.mulf %3, %4 : vector<16x128xf32>
    %8 = vector.shape_cast %7 : vector<16x128xf32> to vector<2x8x128xf32>
    %cst = arith.constant dense<0.000000e+00> : vector<8x128xf32>
    %9 = vector.multi_reduction <add>, %8, %cst [0] : vector<2x8x128xf32> to vector<8x128xf32>
    %10 = arith.addf %6, %9 : vector<8x128xf32>
    %c0_8 = arith.constant 0 : index
    %c0_9 = arith.constant 0 : index
    %c0_10 = arith.constant 0 : index
    %c0_11 = arith.constant 0 : index
    %11 = vector.load %arg4[%c0_8, %c0_9, %c0_10, %c0_11] : memref<1x3x8x128xf32, #tpu.memory_space<vmem>>, vector<1x1x8x128xf32>
    %12 = vector.shape_cast %11 : vector<1x1x8x128xf32> to vector<8x128xf32>
    %13 = vector.shape_cast %10 : vector<8x128xf32> to vector<1x1x8x128xf32>
    tpu.vector_store %arg4[%c0_8, %c0_9, %c0_10, %c0_11], %13 {strides = array<i32>} : memref<1x3x8x128xf32, #tpu.memory_space<vmem>>, vector<1x1x8x128xf32>,
    %c0_12 = arith.constant 0 : index
    %c1 = arith.constant 1 : index
    %c0_13 = arith.constant 0 : index
    %c0_14 = arith.constant 0 : index
    %14 = vector.load %arg4[%c0_12, %c1, %c0_13, %c0_14] : memref<1x3x8x128xf32, #tpu.memory_space<vmem>>, vector<1x1x8x128xf32>
    %15 = vector.shape_cast %14 : vector<1x1x8x128xf32> to vector<8x128xf32>
    %16 = arith.mulf %3, %3 : vector<16x128xf32>
    %17 = vector.shape_cast %16 : vector<16x128xf32> to vector<2x8x128xf32>
    %cst_15 = arith.constant dense<0.000000e+00> : vector<8x128xf32>
    %18 = vector.multi_reduction <add>, %17, %cst_15 [0] : vector<2x8x128xf32> to vector<8x128xf32>
    %19 = arith.addf %15, %18 : vector<8x128xf32>
    %c0_16 = arith.constant 0 : index
    %c1_17 = arith.constant 1 : index
    %c0_18 = arith.constant 0 : index
    %c0_19 = arith.constant 0 : index
    %20 = vector.load %arg4[%c0_16, %c1_17, %c0_18, %c0_19] : memref<1x3x8x128xf32, #tpu.memory_space<vmem>>, vector<1x1x8x128xf32>
    %21 = vector.shape_cast %20 : vector<1x1x8x128xf32> to vector<8x128xf32>
    %22 = vector.shape_cast %19 : vector<8x128xf32> to vector<1x1x8x128xf32>
    tpu.vector_store %arg4[%c0_16, %c1_17, %c0_18, %c0_19], %22 {strides = array<i32>} : memref<1x3x8x128xf32, #tpu.memory_space<vmem>>, vector<1x1x8x128xf32>,
    %c0_20 = arith.constant 0 : index
    %c2 = arith.constant 2 : index
    %c0_21 = arith.constant 0 : index
    %c0_22 = arith.constant 0 : index
    %23 = vector.load %arg4[%c0_20, %c2, %c0_21, %c0_22] : memref<1x3x8x128xf32, #tpu.memory_space<vmem>>, vector<1x1x8x128xf32>
    %24 = vector.shape_cast %23 : vector<1x1x8x128xf32> to vector<8x128xf32>
    %25 = arith.mulf %4, %4 : vector<16x128xf32>
    %26 = vector.shape_cast %25 : vector<16x128xf32> to vector<2x8x128xf32>
    %cst_23 = arith.constant dense<0.000000e+00> : vector<8x128xf32>
    %27 = vector.multi_reduction <add>, %26, %cst_23 [0] : vector<2x8x128xf32> to vector<8x128xf32>
    %28 = arith.addf %24, %27 : vector<8x128xf32>
    %c0_24 = arith.constant 0 : index
    %c2_25 = arith.constant 2 : index
    %c0_26 = arith.constant 0 : index
    %c0_27 = arith.constant 0 : index
    %29 = vector.load %arg4[%c0_24, %c2_25, %c0_26, %c0_27] : memref<1x3x8x128xf32, #tpu.memory_space<vmem>>, vector<1x1x8x128xf32>
    %30 = vector.shape_cast %29 : vector<1x1x8x128xf32> to vector<8x128xf32>
    %31 = vector.shape_cast %28 : vector<8x128xf32> to vector<1x1x8x128xf32>
    tpu.vector_store %arg4[%c0_24, %c2_25, %c0_26, %c0_27], %31 {strides = array<i32>} : memref<1x3x8x128xf32, #tpu.memory_space<vmem>>, vector<1x1x8x128xf32>,
    return
  }
  func.func @transform_0(%arg0: i32, %arg1: i32) -> (i32, i32) {
    %c1_i32 = arith.constant 1 : i32
    %0 = arith.muli %arg0, %c1_i32 : i32
    %1 = arith.addi %0, %arg1 : i32
    %c0_i32 = arith.constant 0 : i32
    %c0_i32_0 = arith.constant 0 : i32
    return %1, %c0_i32 : i32, i32
  }
  func.func @transform_1(%arg0: i32, %arg1: i32) -> (i32, i32) {
    %c1_i32 = arith.constant 1 : i32
    %0 = arith.muli %arg0, %c1_i32 : i32
    %1 = arith.addi %0, %arg1 : i32
    %c0_i32 = arith.constant 0 : i32
    %c0_i32_0 = arith.constant 0 : i32
    return %1, %c0_i32 : i32, i32
  }
  func.func @transform_2(%arg0: i32, %arg1: i32) -> (i32, i32, i32, i32) {
    %c0_i32 = arith.constant 0 : i32
    %c0_i32_0 = arith.constant 0 : i32
    %c0_i32_1 = arith.constant 0 : i32
    %c0_i32_2 = arith.constant 0 : i32
    return %arg0, %c0_i32, %c0_i32_0, %c0_i32_1 : i32, i32, i32, i32
  }
}

</mosaic_0001>

<llo_original>
// kernel: tpu_custom_call.1
$region0: #{tpu_custom_call.1}
  #allocation0 [shape = 'u32[]', space=smem, size = 0x4, offset = 0x4, fixed_abs, tag = 'smem constant byte address 0x4 - core index']
  #allocation1 [shape = 'u32[144,128]{1,0:T(1,128)}', space=vmem, size = 0x12000, scoped, tag = 'internal scratch']
  %s0 = inlined_call_operand.hbm [shape: f32[16,128], index: 0, kind: input, shape index: {}]
  %s1 = inlined_call_operand.hbm [shape: f32[16,128], index: 1, kind: input, shape index: {}]
  %s2 = inlined_call_operand.hbm [shape: f32[1,3,8,128], index: 2, kind: output, shape index: {}]
  %s3 = sld [smem:[#allocation0]]
  $region30: #{tpu_custom_call.1} parent=0
    _
  %s5 = ssub.s32 1, %s3
  %s6 = scalar_select 0, %s5, %s3
  $region1: #{tpu_custom_call.1} parent=0
    #allocation2 [shape = 'u8[8192]{0}', space=vmem, size = 0x2000, scoped, tag = 'input window, operand 0, single buffered']
    #allocation3 [shape = 's32[1]{0}', space=sflag, size = 0x4, scoped, tag = 'scoped memory for tpu_custom_call.1']
    #allocation4 [shape = 's32[1]{0}', space=sflag, size = 0x4, scoped, tag = 'scoped memory for tpu_custom_call.1']
    #allocation5 [shape = 'u8[8192]{0}', space=vmem, size = 0x2000, scoped, tag = 'input window, operand 1, single buffered']
    #allocation6 [shape = 's32[1]{0}', space=sflag, size = 0x4, scoped, tag = 'scoped memory for tpu_custom_call.1']
    #allocation7 [shape = 'u8[12288]{0}', space=vmem, size = 0x3000, scoped, tag = 'output window, operand 0, single buffered']
    %7 = vsyncpa [#allocation3], 0
    %8 = vsyncpa [#allocation6], 0
    %9 = vsyncpa [#allocation4], 0
    // Predicated region
    $region2: #{tpu_custom_call.1} parent=1 // pred_check
      _
    $region3: #{tpu_custom_call.1} parent=1 // pred_check_branch
      %11 = sbr.rel (0) target = $region5
    $region4: #{tpu_custom_call.1} parent=1 // pred_region
      %s12 = sadd.s32 0, 0
      %s13 = smul.u32 2, %s12
      %s15 = ssub.s32 256, 256
      %16 = vsyncadd [#allocation3], %s15
      %s17 = smul.addr %s13, 128
      %s18 = scalar_lea.hbm %s0, %s17
      %s19 = sshll.u32 [#allocation2], 4
      %s20 = int_to_ptr.vmem [resolvable:$true] %s19
      %25 = dma.hbm_to_vmem [thread:$0]  %s18, 256, %s20, [#allocation3], 128, 128, 8
    $region5: #{tpu_custom_call.1} parent=1 // pred_fallthru
      _
    // Predicated region
    $region6: #{tpu_custom_call.1} parent=1 // pred_check
      _
    $region7: #{tpu_custom_call.1} parent=1 // pred_check_branch
      %27 = sbr.rel (0) target = $region9
    $region8: #{tpu_custom_call.1} parent=1 // pred_region
      %s28 = sadd.s32 0, 0
      %s29 = smul.u32 2, %s28
      %s31 = ssub.s32 256, 256
      %32 = vsyncadd [#allocation6], %s31
      %s33 = smul.addr %s29, 128
      %s34 = scalar_lea.hbm %s1, %s33
      %s35 = sshll.u32 [#allocation5], 4
      %s36 = int_to_ptr.vmem [resolvable:$true] %s35
      %41 = dma.hbm_to_vmem [thread:$0]  %s34, 256, %s36, [#allocation6], 128, 128, 8
    $region9: #{tpu_custom_call.1} parent=1 // pred_fallthru
      _
    // Predicated region
    $region10: #{tpu_custom_call.1} parent=1 // pred_check
      _
    $region11: #{tpu_custom_call.1} parent=1 // pred_check_branch
      %43 = sbr.rel (0) target = $region13
    $region12: #{tpu_custom_call.1} parent=1 // pred_region
      %44 = dma.done [#allocation3], 256
    $region13: #{tpu_custom_call.1} parent=1 // pred_fallthru
      _
    // Predicated region
    $region14: #{tpu_custom_call.1} parent=1 // pred_check
      _
    $region15: #{tpu_custom_call.1} parent=1 // pred_check_branch
      %46 = sbr.rel (0) target = $region17
    $region16: #{tpu_custom_call.1} parent=1 // pred_region
      %47 = dma.done [#allocation6], 256
    $region17: #{tpu_custom_call.1} parent=1 // pred_fallthru
      _
    %s48 = sadd.s32 0, 0
    %s49 = smul.u32 2, %s48
    %s50 = sadd.s32 0, 0
    %s51 = smul.u32 2, %s50
    %p52 = scmp.eq.s32.totalorder 0, 0
    // Predicated region
    $region18: #{tpu_custom_call.1} parent=1 // pred_check
      %p53 = pneg %p52
    $region19: #{tpu_custom_call.1} parent=1 // pred_check_branch
      %55 = sbr.rel (%p53) target = $region21
    $region20: #{tpu_custom_call.1} parent=1 // pred_region
      %56 = vst [vmem:[#allocation7] sm:$0xff] 0.0
      %57 = vst [vmem:[#allocation7 + $0x8] sm:$0xff] 0.0
      %58 = vst [vmem:[#allocation7 + $0x10] sm:$0xff] 0.0
    $region21: #{tpu_custom_call.1} parent=1 // pred_fallthru
      _
    %v59 = vld [vmem:[#allocation2] sm:$0xff]
    %v60 = vld [vmem:[#allocation2 + $0x8] sm:$0xff]
    %v61 = vld [vmem:[#allocation5] sm:$0xff]
    %v62 = vld [vmem:[#allocation5 + $0x8] sm:$0xff]
    %v63 = vld [vmem:[#allocation7] sm:$0xff]
    %v64 = vmul.f32 %v59, %v61
    %v65 = vmul.f32 %v60, %v62
    %v66 = vadd.f32 %v64, %v65
    %v67 = vadd.f32 %v63, %v66
    %68 = vst [vmem:[#allocation7] sm:$0xff] %v67
    %s69 = scalar_lea.vmem [#allocation7], 8
    %v70 = vld [vmem:[%s69] sm:$0xff]
    %v71 = vmul.f32 %v59, %v59
    %v72 = vmul.f32 %v60, %v60
    %v73 = vadd.f32 %v71, %v72
    %v74 = vadd.f32 %v70, %v73
    %75 = vst [vmem:[%s69] sm:$0xff] %v74
    %s76 = scalar_lea.vmem [#allocation7], 16
    %v77 = vld [vmem:[%s76] sm:$0xff]
    %v78 = vmul.f32 %v61, %v61
    %v79 = vmul.f32 %v62, %v62
    %v80 = vadd.f32 %v78, %v79
    %v81 = vadd.f32 %v77, %v80
    %82 = vst [vmem:[%s76] sm:$0xff] %v81
    // Predicated region
    $region22: #{tpu_custom_call.1} parent=1 // pred_check
      _
    $region23: #{tpu_custom_call.1} parent=1 // pred_check_branch
      %84 = sbr.rel (0) target = $region25
    $region24: #{tpu_custom_call.1} parent=1 // pred_region
      %s86 = ssub.s32 384, 384
      %87 = vsyncadd [#allocation4], %s86
      %s88 = sshll.u32 [#allocation7], 4
      %s89 = int_to_ptr.vmem [resolvable:$true] %s88
      %94 = dma.vmem_to_hbm [thread:$0]  %s89, 384, %s2, [#allocation4], 128, 128, 8
    $region25: #{tpu_custom_call.1} parent=1 // pred_fallthru
      _
    // Predicated region
    $region26: #{tpu_custom_call.1} parent=1 // pred_check
      _
    $region27: #{tpu_custom_call.1} parent=1 // pred_check_branch
      %96 = sbr.rel (0) target = $region29
    $region28: #{tpu_custom_call.1} parent=1 // pred_region
      %97 = dma.done [#allocation4], 384
    $region29: #{tpu_custom_call.1} parent=1 // pred_fallthru
      _
    %98 = vsyncpa [#allocation3], 1
    %99 = vsyncpa [#allocation6], 1
    %100 = vsyncpa [#allocation4], 1

</llo_original>
